<compile_context>
chip_gen: v6e
topology: v6e:2x2x1
jax: 0.10.0
libtpu: 0.0.40
codegen_flags: <defaults>
</compile_context>

<pallas_src>
import math

import jax
import jax.numpy as jnp
from jax.experimental import pallas as pl
from jax.experimental.pallas import tpu as pltpu


def _round_up(x, m):
    return (x + m - 1) // m * m


# ------------------------------ Pallas kernel -------------------------------

def _latent_block_body(x_ref, t_ref, w1_ref, b1_ref, wt_ref, bt_ref,
                       w2_ref, b2_ref, ws_ref, bs_ref, o_ref):
    x = x_ref[...]                                   # (tm, Cin) f32
    xb = x.astype(jnp.bfloat16)
    tb = t_ref[...].astype(jnp.bfloat16)

    # h = relu(fc1(x))
    h = jnp.dot(xb, w1_ref[...], preferred_element_type=jnp.float32) + b1_ref[...]
    h = jnp.maximum(h, 0.0)
    # h = h + time_mlp(t_emb)
    h = h + jnp.dot(tb, wt_ref[...], preferred_element_type=jnp.float32) + bt_ref[...]
    # h = relu(fc2(h))
    h = jnp.dot(h.astype(jnp.bfloat16), w2_ref[...],
                preferred_element_type=jnp.float32) + b2_ref[...]
    h = jnp.maximum(h, 0.0)
    # residual: shortcut(x)
    if ws_ref is None:
        sc = x                                        # Identity (Cin == Cout)
    else:
        sc = jnp.dot(xb, ws_ref[...], preferred_element_type=jnp.float32) + bs_ref[...]
    o_ref[...] = (h + sc).astype(o_ref.dtype)


def _make_kernel(identity_shortcut):
    if identity_shortcut:
        def kernel(x_ref, t_ref, w1_ref, b1_ref, wt_ref, bt_ref,
                   w2_ref, b2_ref, o_ref):
            _latent_block_body(x_ref, t_ref, w1_ref, b1_ref, wt_ref, bt_ref,
                               w2_ref, b2_ref, None, None, o_ref)
    else:
        def kernel(x_ref, t_ref, w1_ref, b1_ref, wt_ref, bt_ref,
                   w2_ref, b2_ref, ws_ref, bs_ref, o_ref):
            _latent_block_body(x_ref, t_ref, w1_ref, b1_ref, wt_ref, bt_ref,
                               w2_ref, b2_ref, ws_ref, bs_ref, o_ref)
    return kernel


# ------------------------------ host-side glue -------------------------------

def latent_block_forward(x, t_emb, kparams, *, tm=256, single_block_max=512):
    """Fused LatentBlock forward on TPU via a single pallas_call.

    Args:
      x:        (M, Cin)  activations.
      t_emb:    (M, Td)   time embeddings.
      kparams:  dict from prepare_kernel_params().
      tm:       batch tile used only when M > single_block_max.
      single_block_max: batches up to this size run as one untiled block
                        (no padding, no grid overhead).
    """
    M, Cin = x.shape
    Td = t_emb.shape[1]
    Cout = kparams["w1"].shape[1]
    identity = "ws" not in kparams

    x = x.astype(jnp.float32)
    t_emb = t_emb.astype(jnp.float32)

    if M <= single_block_max:
        tm_eff, Mp = M, M                      # single block, full-dim blocks
    else:
        tm_eff = tm
        Mp = _round_up(M, tm_eff)
    if Mp != M:
        x = jnp.pad(x, ((0, Mp - M), (0, 0)))
        t_emb = jnp.pad(t_emb, ((0, Mp - M), (0, 0)))

    in_specs = [
        pl.BlockSpec((tm_eff, Cin), lambda i: (i, 0)),   # x
        pl.BlockSpec((tm_eff, Td), lambda i: (i, 0)),    # t_emb
        pl.BlockSpec((Cin, Cout), lambda i: (0, 0)),     # w1  (bf16, resident)
        pl.BlockSpec((1, Cout), lambda i: (0, 0)),       # b1  (f32)
        pl.BlockSpec((Td, Cout), lambda i: (0, 0)),      # wt  (bf16)
        pl.BlockSpec((1, Cout), lambda i: (0, 0)),       # bt  (f32)
        pl.BlockSpec((Cout, Cout), lambda i: (0, 0)),    # w2  (bf16)
        pl.BlockSpec((1, Cout), lambda i: (0, 0)),       # b2  (f32)
    ]
    args = [x, t_emb, kparams["w1"], kparams["b1"], kparams["wt"],
            kparams["bt"], kparams["w2"], kparams["b2"]]
    if not identity:
        in_specs += [pl.BlockSpec((Cin, Cout), lambda i: (0, 0)),   # ws
                     pl.BlockSpec((1, Cout), lambda i: (0, 0))]     # bs
        args += [kparams["ws"], kparams["bs"]]

    out = pl.pallas_call(
        _make_kernel(identity),
        out_shape=jax.ShapeDtypeStruct((Mp, Cout), jnp.float32),
        grid=(Mp // tm_eff,),
        in_specs=in_specs,
        out_specs=pl.BlockSpec((tm_eff, Cout), lambda i: (i, 0)),
        compiler_params=pltpu.CompilerParams(
            dimension_semantics=("parallel",)),
    )(*args)
    return out if Mp == M else out[:M]


# ------------------------------- parameters ---------------------------------

def init_latent_block_params(key, in_channels, out_channels, time_emb_dim):
    """PyTorch-style nn.Linear init: (out,in) weights, U(+-1/sqrt(fan_in)), f32."""
    ks = jax.random.split(key, 8)

    def lin(kw, kb, fan_in, fan_out):
        bound = 1.0 / math.sqrt(fan_in)
        w = jax.random.uniform(kw, (fan_out, fan_in), jnp.float32, -bound, bound)
        b = jax.random.uniform(kb, (fan_out,), jnp.float32, -bound, bound)
        return w, b

    p = {}
    p["fc1_w"], p["fc1_b"] = lin(ks[0], ks[1], in_channels, out_channels)
    p["fc2_w"], p["fc2_b"] = lin(ks[2], ks[3], out_channels, out_channels)
    p["time_w"], p["time_b"] = lin(ks[4], ks[5], time_emb_dim, out_channels)
    if in_channels != out_channels:
        p["sc_w"], p["sc_b"] = lin(ks[6], ks[7], in_channels, out_channels)
    return p


def prepare_kernel_params(p):
    """One-time layout/dtype prep: (in,out) bf16 weights, (1,out) f32 biases."""
    kp = {
        "w1": p["fc1_w"].T.astype(jnp.bfloat16),
        "b1": p["fc1_b"].reshape(1, -1).astype(jnp.float32),
        "wt": p["time_w"].T.astype(jnp.bfloat16),
        "bt": p["time_b"].reshape(1, -1).astype(jnp.float32),
        "w2": p["fc2_w"].T.astype(jnp.bfloat16),
        "b2": p["fc2_b"].reshape(1, -1).astype(jnp.float32),
    }
    if "sc_w" in p:
        kp["ws"] = p["sc_w"].T.astype(jnp.bfloat16)
        kp["bs"] = p["sc_b"].reshape(1, -1).astype(jnp.float32)
    return kp


# ----------------------------- pure-JAX reference ----------------------------

def latent_block_ref(x, t_emb, p):
    h = jax.nn.relu(x @ p["fc1_w"].T + p["fc1_b"])
    h = h + (t_emb @ p["time_w"].T + p["time_b"])
    h = jax.nn.relu(h @ p["fc2_w"].T + p["fc2_b"])
    sc = (x @ p["sc_w"].T + p["sc_b"]) if "sc_w" in p else x
    return h + sc


if __name__ == "__main__":
    key = jax.random.PRNGKey(0)
    k_p1, k_p2, k_x, k_t, k_x2, k_t2, k_x3, k_t3 = jax.random.split(key, 8)

    # Case 1: in_channels != out_channels -> Linear shortcut, batch=2.
    Cin, Cout, Td, B = 32, 64, 16, 2
    params = init_latent_block_params(k_p1, Cin, Cout, Td)
    kparams = prepare_kernel_params(params)
    x = jax.random.normal(k_x, (B, Cin), jnp.float32)
    t = jax.random.normal(k_t, (B, Td), jnp.float32)
    out = jax.block_until_ready(latent_block_forward(x, t, kparams))
    ref = latent_block_ref(x, t, params)
    assert out.shape == (B, Cout), out.shape
    assert jnp.allclose(out, ref, rtol=2e-2, atol=2e-2), float(
        jnp.max(jnp.abs(out - ref)))

    # Case 2: in_channels == out_channels -> Identity shortcut, batch=2.
    params2 = init_latent_block_params(k_p2, 64, 64, Td)
    kparams2 = prepare_kernel_params(params2)
    x2 = jax.random.normal(k_x2, (B, 64), jnp.float32)
    t2 = jax.random.normal(k_t2, (B, Td), jnp.float32)
    out2 = jax.block_until_ready(latent_block_forward(x2, t2, kparams2))
    ref2 = latent_block_ref(x2, t2, params2)
    assert out2.shape == (B, 64), out2.shape
    assert jnp.allclose(out2, ref2, rtol=2e-2, atol=2e-2), float(
        jnp.max(jnp.abs(out2 - ref2)))

    # Case 3: larger batch, force the tiled "parallel" M-grid path
    # (padding + multi-block + resident weights across grid steps).
    B3 = 300
    x3 = jax.random.normal(k_x3, (B3, Cin), jnp.float32)
    t3 = jax.random.normal(k_t3, (B3, Td), jnp.float32)
    out3 = jax.block_until_ready(
        latent_block_forward(x3, t3, kparams, tm=128, single_block_max=128))
    ref3 = latent_block_ref(x3, t3, params)
    assert out3.shape == (B3, Cout), out3.shape
    assert jnp.allclose(out3, ref3, rtol=2e-2, atol=2e-2), float(
        jnp.max(jnp.abs(out3 - ref3)))

    print("KERNEL_OK")
</pallas_src>

<mosaic_0001>
module attributes {stable_mosaic.version = 11 : i64} {
  func.func @kernel(%arg0: i32, %arg1: memref<2x32xf32, #tpu.memory_space<vmem>>, %arg2: memref<2x16xf32, #tpu.memory_space<vmem>>, %arg3: memref<32x64xbf16, #tpu.memory_space<vmem>>, %arg4: memref<1x64xf32, #tpu.memory_space<vmem>>, %arg5: memref<16x64xbf16, #tpu.memory_space<vmem>>, %arg6: memref<1x64xf32, #tpu.memory_space<vmem>>, %arg7: memref<64x64xbf16, #tpu.memory_space<vmem>>, %arg8: memref<1x64xf32, #tpu.memory_space<vmem>>, %arg9: memref<32x64xbf16, #tpu.memory_space<vmem>>, %arg10: memref<1x64xf32, #tpu.memory_space<vmem>>, %arg11: memref<2x64xf32, #tpu.memory_space<vmem>>) attributes {dimension_semantics = [#tpu.dimension_semantics<parallel>], iteration_bounds = array<i64: 1>, scalar_prefetch = 0 : i64, scratch_operands = 0 : i64, tpu.core_type = #tpu.core_type<tc>, window_params = [{transform_indices = @transform_0, window_bounds = array<i64: 2, 32>}, {transform_indices = @transform_1, window_bounds = array<i64: 2, 16>}, {pipeline_mode = #tpu.pipeline_mode<synchronous>, transform_indices = @transform_2, window_bounds = array<i64: 32, 64>}, {pipeline_mode = #tpu.pipeline_mode<synchronous>, transform_indices = @transform_3, window_bounds = array<i64: 1, 64>}, {pipeline_mode = #tpu.pipeline_mode<synchronous>, transform_indices = @transform_4, window_bounds = array<i64: 16, 64>}, {pipeline_mode = #tpu.pipeline_mode<synchronous>, transform_indices = @transform_5, window_bounds = array<i64: 1, 64>}, {pipeline_mode = #tpu.pipeline_mode<synchronous>, transform_indices = @transform_6, window_bounds = array<i64: 64, 64>}, {pipeline_mode = #tpu.pipeline_mode<synchronous>, transform_indices = @transform_7, window_bounds = array<i64: 1, 64>}, {pipeline_mode = #tpu.pipeline_mode<synchronous>, transform_indices = @transform_8, window_bounds = array<i64: 32, 64>}, {pipeline_mode = #tpu.pipeline_mode<synchronous>, transform_indices = @transform_9, window_bounds = array<i64: 1, 64>}, {transform_indices = @transform_10, window_bounds = array<i64: 2, 64>}]} {
    %c0 = arith.constant 0 : index
    %c0_0 = arith.constant 0 : index
    %0 = vector.load %arg1[%c0, %c0_0] : memref<2x32xf32, #tpu.memory_space<vmem>>, vector<2x32xf32>
    %1 = arith.truncf %0 : vector<2x32xf32> to vector<2x32xbf16>
    %c0_1 = arith.constant 0 : index
    %c0_2 = arith.constant 0 : index
    %2 = vector.load %arg2[%c0_1, %c0_2] : memref<2x16xf32, #tpu.memory_space<vmem>>, vector<2x16xf32>
    %3 = arith.truncf %2 : vector<2x16xf32> to vector<2x16xbf16>
    %c0_3 = arith.constant 0 : index
    %c0_4 = arith.constant 0 : index
    %4 = vector.load %arg3[%c0_3, %c0_4] : memref<32x64xbf16, #tpu.memory_space<vmem>>, vector<32x64xbf16>
    %cst = arith.constant dense<0.000000e+00> : vector<2x64xf32>
    %5 = tpu.matmul %1, %4, %cst {dimension_numbers = #tpu.dot_dimension_numbers<[1], [0], [0], [1], [0, 0, 1, 1], [], []>} : vector<2x32xbf16>, vector<32x64xbf16>, vector<2x64xf32> -> vector<2x64xf32>
    %c0_5 = arith.constant 0 : index
    %c0_6 = arith.constant 0 : index
    %6 = vector.load %arg4[%c0_5, %c0_6] : memref<1x64xf32, #tpu.memory_space<vmem>>, vector<1x64xf32>
    %7 = vector.broadcast %6 : vector<1x64xf32> to vector<2x64xf32>
    %8 = arith.addf %5, %7 : vector<2x64xf32>
    %cst_7 = arith.constant 0.000000e+00 : f32
    %9 = vector.broadcast %cst_7 : f32 to vector<2x64xf32>
    %10 = arith.maximumf %8, %9 : vector<2x64xf32>
    %c0_8 = arith.constant 0 : index
    %c0_9 = arith.constant 0 : index
    %11 = vector.load %arg5[%c0_8, %c0_9] : memref<16x64xbf16, #tpu.memory_space<vmem>>, vector<16x64xbf16>
    %cst_10 = arith.constant dense<0.000000e+00> : vector<2x64xf32>
    %12 = tpu.matmul %3, %11, %cst_10 {dimension_numbers = #tpu.dot_dimension_numbers<[1], [0], [0], [1], [0, 0, 1, 1], [], []>} : vector<2x16xbf16>, vector<16x64xbf16>, vector<2x64xf32> -> vector<2x64xf32>
    %13 = arith.addf %10, %12 : vector<2x64xf32>
    %c0_11 = arith.constant 0 : index
    %c0_12 = arith.constant 0 : index
    %14 = vector.load %arg6[%c0_11, %c0_12] : memref<1x64xf32, #tpu.memory_space<vmem>>, vector<1x64xf32>
    %15 = vector.broadcast %14 : vector<1x64xf32> to vector<2x64xf32>
    %16 = arith.addf %13, %15 : vector<2x64xf32>
    %17 = arith.truncf %16 : vector<2x64xf32> to vector<2x64xbf16>
    %c0_13 = arith.constant 0 : index
    %c0_14 = arith.constant 0 : index
    %18 = vector.load %arg7[%c0_13, %c0_14] : memref<64x64xbf16, #tpu.memory_space<vmem>>, vector<64x64xbf16>
    %cst_15 = arith.constant dense<0.000000e+00> : vector<2x64xf32>
    %19 = tpu.matmul %17, %18, %cst_15 {dimension_numbers = #tpu.dot_dimension_numbers<[1], [0], [0], [1], [0, 0, 1, 1], [], []>} : vector<2x64xbf16>, vector<64x64xbf16>, vector<2x64xf32> -> vector<2x64xf32>
    %c0_16 = arith.constant 0 : index
    %c0_17 = arith.constant 0 : index
    %20 = vector.load %arg8[%c0_16, %c0_17] : memref<1x64xf32, #tpu.memory_space<vmem>>, vector<1x64xf32>
    %21 = vector.broadcast %20 : vector<1x64xf32> to vector<2x64xf32>
    %22 = arith.addf %19, %21 : vector<2x64xf32>
    %cst_18 = arith.constant 0.000000e+00 : f32
    %23 = vector.broadcast %cst_18 : f32 to vector<2x64xf32>
    %24 = arith.maximumf %22, %23 : vector<2x64xf32>
    %c0_19 = arith.constant 0 : index
    %c0_20 = arith.constant 0 : index
    %25 = vector.load %arg9[%c0_19, %c0_20] : memref<32x64xbf16, #tpu.memory_space<vmem>>, vector<32x64xbf16>
    %cst_21 = arith.constant dense<0.000000e+00> : vector<2x64xf32>
    %26 = tpu.matmul %1, %25, %cst_21 {dimension_numbers = #tpu.dot_dimension_numbers<[1], [0], [0], [1], [0, 0, 1, 1], [], []>} : vector<2x32xbf16>, vector<32x64xbf16>, vector<2x64xf32> -> vector<2x64xf32>
    %c0_22 = arith.constant 0 : index
    %c0_23 = arith.constant 0 : index
    %27 = vector.load %arg10[%c0_22, %c0_23] : memref<1x64xf32, #tpu.memory_space<vmem>>, vector<1x64xf32>
    %28 = vector.broadcast %27 : vector<1x64xf32> to vector<2x64xf32>
    %29 = arith.addf %26, %28 : vector<2x64xf32>
    %30 = arith.addf %24, %29 : vector<2x64xf32>
    %c0_24 = arith.constant 0 : index
    %c0_25 = arith.constant 0 : index
    %31 = vector.load %arg11[%c0_24, %c0_25] : memref<2x64xf32, #tpu.memory_space<vmem>>, vector<2x64xf32>
    tpu.vector_store %arg11[%c0_24, %c0_25], %30 {strides = array<i32>} : memref<2x64xf32, #tpu.memory_space<vmem>>, vector<2x64xf32>,
    return
  }
  func.func @transform_0(%arg0: i32) -> (i32, i32) {
    %c0_i32 = arith.constant 0 : i32
    %c0_i32_0 = arith.constant 0 : i32
    return %arg0, %c0_i32 : i32, i32
  }
  func.func @transform_1(%arg0: i32) -> (i32, i32) {
    %c0_i32 = arith.constant 0 : i32
    %c0_i32_0 = arith.constant 0 : i32
    return %arg0, %c0_i32 : i32, i32
  }
  func.func @transform_2(%arg0: i32) -> (i32, i32) {
    %c0_i32 = arith.constant 0 : i32
    %c0_i32_0 = arith.constant 0 : i32
    %c0_i32_1 = arith.constant 0 : i32
    return %c0_i32, %c0_i32_0 : i32, i32
  }
  func.func @transform_3(%arg0: i32) -> (i32, i32) {
    %c0_i32 = arith.constant 0 : i32
    %c0_i32_0 = arith.constant 0 : i32
    %c0_i32_1 = arith.constant 0 : i32
    return %c0_i32, %c0_i32_0 : i32, i32
  }
  func.func @transform_4(%arg0: i32) -> (i32, i32) {
    %c0_i32 = arith.constant 0 : i32
    %c0_i32_0 = arith.constant 0 : i32
    %c0_i32_1 = arith.constant 0 : i32
    return %c0_i32, %c0_i32_0 : i32, i32
  }
  func.func @transform_5(%arg0: i32) -> (i32, i32) {
    %c0_i32 = arith.constant 0 : i32
    %c0_i32_0 = arith.constant 0 : i32
    %c0_i32_1 = arith.constant 0 : i32
    return %c0_i32, %c0_i32_0 : i32, i32
  }
  func.func @transform_6(%arg0: i32) -> (i32, i32) {
    %c0_i32 = arith.constant 0 : i32
    %c0_i32_0 = arith.constant 0 : i32
    %c0_i32_1 = arith.constant 0 : i32
    return %c0_i32, %c0_i32_0 : i32, i32
  }
  func.func @transform_7(%arg0: i32) -> (i32, i32) {
    %c0_i32 = arith.constant 0 : i32
    %c0_i32_0 = arith.constant 0 : i32
    %c0_i32_1 = arith.constant 0 : i32
    return %c0_i32, %c0_i32_0 : i32, i32
  }
  func.func @transform_8(%arg0: i32) -> (i32, i32) {
    %c0_i32 = arith.constant 0 : i32
    %c0_i32_0 = arith.constant 0 : i32
    %c0_i32_1 = arith.constant 0 : i32
    return %c0_i32, %c0_i32_0 : i32, i32
  }
  func.func @transform_9(%arg0: i32) -> (i32, i32) {
    %c0_i32 = arith.constant 0 : i32
    %c0_i32_0 = arith.constant 0 : i32
    %c0_i32_1 = arith.constant 0 : i32
    return %c0_i32, %c0_i32_0 : i32, i32
  }
  func.func @transform_10(%arg0: i32) -> (i32, i32) {
    %c0_i32 = arith.constant 0 : i32
    %c0_i32_0 = arith.constant 0 : i32
    return %arg0, %c0_i32 : i32, i32
  }
}

</mosaic_0001>

<llo_original>
// kernel: tpu_custom_call.1
$region0: #{tpu_custom_call.1}
  #allocation0 [shape = 'u32[]', space=smem, size = 0x4, offset = 0x4, fixed_abs, tag = 'smem constant byte address 0x4 - core index']
  #allocation1 [shape = 'u32[144,128]{1,0:T(1,128)}', space=vmem, size = 0x12000, scoped, tag = 'internal scratch']
  %s0 = inlined_call_operand.hbm [shape: f32[2,32], index: 0, kind: input, shape index: {}]
  %s1 = inlined_call_operand.hbm [shape: f32[2,16], index: 1, kind: input, shape index: {}]
  %s2 = inlined_call_operand.hbm [shape: bf16[32,64], index: 2, kind: input, shape index: {}]
  %s3 = inlined_call_operand.vmem [shape: f32[1,64], index: 3, kind: input, shape index: {}]
  %s4 = inlined_call_operand.hbm [shape: bf16[16,64], index: 4, kind: input, shape index: {}]
  %s5 = inlined_call_operand.vmem [shape: f32[1,64], index: 5, kind: input, shape index: {}]
  %s6 = inlined_call_operand.hbm [shape: bf16[64,64], index: 6, kind: input, shape index: {}]
  %s7 = inlined_call_operand.vmem [shape: f32[1,64], index: 7, kind: input, shape index: {}]
  %s8 = inlined_call_operand.hbm [shape: bf16[32,64], index: 8, kind: input, shape index: {}]
  %s9 = inlined_call_operand.vmem [shape: f32[1,64], index: 9, kind: input, shape index: {}]
  %s10 = inlined_call_operand.hbm [shape: f32[2,64], index: 10, kind: output, shape index: {}]
  %s11 = sld [smem:[#allocation0]]
  $region74: #{tpu_custom_call.1} parent=0
    _
  %s13 = ssub.s32 1, %s11
  %s14 = scalar_select 0, %s13, %s11
  $region1: #{tpu_custom_call.1} parent=0
    #allocation2 [shape = 'u8[1024]{0}', space=vmem, size = 0x400, scoped, tag = 'input window, operand 0, single buffered']
    #allocation3 [shape = 's32[1]{0}', space=sflag, size = 0x4, scoped, tag = 'scoped memory for tpu_custom_call.1']
    #allocation4 [shape = 's32[1]{0}', space=sflag, size = 0x4, scoped, tag = 'scoped memory for tpu_custom_call.1']
    #allocation5 [shape = 'u8[1024]{0}', space=vmem, size = 0x400, scoped, tag = 'input window, operand 1, single buffered']
    #allocation6 [shape = 's32[1]{0}', space=sflag, size = 0x4, scoped, tag = 'scoped memory for tpu_custom_call.1']
    #allocation7 [shape = 'u8[8192]{0}', space=vmem, size = 0x2000, scoped, tag = 'input window, operand 2, single buffered']
    #allocation8 [shape = 'u8[4096]{0}', space=vmem, size = 0x1000, scoped, tag = 'input window, operand 4, single buffered']
    #allocation9 [shape = 's32[1]{0}', space=sflag, size = 0x4, scoped, tag = 'scoped memory for tpu_custom_call.1']
    #allocation10 [shape = 'u8[16384]{0}', space=vmem, size = 0x4000, scoped, tag = 'input window, operand 6, single buffered']
    #allocation11 [shape = 'u8[8192]{0}', space=vmem, size = 0x2000, scoped, tag = 'input window, operand 8, single buffered']
    #allocation12 [shape = 's32[1]{0}', space=sflag, size = 0x4, scoped, tag = 'scoped memory for tpu_custom_call.1']
    #allocation13 [shape = 'u8[1024]{0}', space=vmem, size = 0x400, scoped, tag = 'output window, operand 0, single buffered']
    %15 = vsyncpa [#allocation3], 0
    %16 = vsyncpa [#allocation6], 0
    %17 = vsyncpa [#allocation9], 0
    %18 = vsyncpa [#allocation12], 0
    %19 = vsyncpa [#allocation4], 0
    // Predicated region
    $region2: #{tpu_custom_call.1} parent=1 // pred_check
      _
    $region3: #{tpu_custom_call.1} parent=1 // pred_check_branch
      %21 = sbr.rel (0) target = $region5
    $region4: #{tpu_custom_call.1} parent=1 // pred_region
      %s23 = ssub.s32 32, 32
      %24 = vsyncadd [#allocation3], %s23
      %s26 = sshll.u32 [#allocation2], 4
      %s27 = int_to_ptr.vmem [resolvable:$true] %s26
      %29 = dma.hbm_to_vmem [thread:$0]  %s0, 32, %s27, [#allocation3]
    $region5: #{tpu_custom_call.1} parent=1 // pred_fallthru
      _
    // Predicated region
    $region6: #{tpu_custom_call.1} parent=1 // pred_check
      _
    $region7: #{tpu_custom_call.1} parent=1 // pred_check_branch
      %31 = sbr.rel (0) target = $region9
    $region8: #{tpu_custom_call.1} parent=1 // pred_region
      %s33 = ssub.s32 32, 32
      %34 = vsyncadd [#allocation6], %s33
      %s36 = sshll.u32 [#allocation5], 4
      %s37 = int_to_ptr.vmem [resolvable:$true] %s36
      %39 = dma.hbm_to_vmem [thread:$0]  %s1, 32, %s37, [#allocation6]
    $region9: #{tpu_custom_call.1} parent=1 // pred_fallthru
      _
    // Predicated region
    $region10: #{tpu_custom_call.1} parent=1 // pred_check
      _
    $region11: #{tpu_custom_call.1} parent=1 // pred_check_branch
      %41 = sbr.rel (0) target = $region13
    $region12: #{tpu_custom_call.1} parent=1 // pred_region
      %s43 = ssub.s32 256, 256
      %44 = vsyncadd [#allocation6], %s43
      %s45 = sshll.u32 [#allocation7], 4
      %s46 = int_to_ptr.vmem [resolvable:$true] %s45
      %51 = dma.hbm_to_vmem [thread:$0]  %s2, 256, %s46, [#allocation6], 64, 64, 4
    $region13: #{tpu_custom_call.1} parent=1 // pred_fallthru
      _
    // Predicated region
    $region14: #{tpu_custom_call.1} parent=1 // pred_check
      _
    $region15: #{tpu_custom_call.1} parent=1 // pred_check_branch
      %53 = sbr.rel (0) target = $region17
    $region16: #{tpu_custom_call.1} parent=1 // pred_region
      _
    $region17: #{tpu_custom_call.1} parent=1 // pred_fallthru
      _
    // Predicated region
    $region18: #{tpu_custom_call.1} parent=1 // pred_check
      _
    $region19: #{tpu_custom_call.1} parent=1 // pred_check_branch
      %55 = sbr.rel (0) target = $region21
    $region20: #{tpu_custom_call.1} parent=1 // pred_region
      %s57 = ssub.s32 128, 128
      %58 = vsyncadd [#allocation9], %s57
      %s59 = sshll.u32 [#allocation8], 4
      %s60 = int_to_ptr.vmem [resolvable:$true] %s59
      %65 = dma.hbm_to_vmem [thread:$0]  %s4, 128, %s60, [#allocation9], 64, 64, 4
    $region21: #{tpu_custom_call.1} parent=1 // pred_fallthru
      _
    // Predicated region
    $region22: #{tpu_custom_call.1} parent=1 // pred_check
      _
    $region23: #{tpu_custom_call.1} parent=1 // pred_check_branch
      %67 = sbr.rel (0) target = $region25
    $region24: #{tpu_custom_call.1} parent=1 // pred_region
      _
    $region25: #{tpu_custom_call.1} parent=1 // pred_fallthru
      _
    // Predicated region
    $region26: #{tpu_custom_call.1} parent=1 // pred_check
      _
    $region27: #{tpu_custom_call.1} parent=1 // pred_check_branch
      %69 = sbr.rel (0) target = $region29
    $region28: #{tpu_custom_call.1} parent=1 // pred_region
      %s71 = ssub.s32 512, 512
      %72 = vsyncadd [#allocation9], %s71
      %s73 = sshll.u32 [#allocation10], 4
      %s74 = int_to_ptr.vmem [resolvable:$true] %s73
      %79 = dma.hbm_to_vmem [thread:$0]  %s6, 512, %s74, [#allocation9], 64, 64, 4
    $region29: #{tpu_custom_call.1} parent=1 // pred_fallthru
      _
    // Predicated region
    $region30: #{tpu_custom_call.1} parent=1 // pred_check
      _
    $region31: #{tpu_custom_call.1} parent=1 // pred_check_branch
      %81 = sbr.rel (0) target = $region33
    $region32: #{tpu_custom_call.1} parent=1 // pred_region
      _
    $region33: #{tpu_custom_call.1} parent=1 // pred_fallthru
      _
    // Predicated region
    $region34: #{tpu_custom_call.1} parent=1 // pred_check
      _
    $region35: #{tpu_custom_call.1} parent=1 // pred_check_branch
      %83 = sbr.rel (0) target = $region37
    $region36: #{tpu_custom_call.1} parent=1 // pred_region
      %s85 = ssub.s32 256, 256
      %86 = vsyncadd [#allocation12], %s85
      %s87 = sshll.u32 [#allocation11], 4
      %s88 = int_to_ptr.vmem [resolvable:$true] %s87
      %93 = dma.hbm_to_vmem [thread:$0]  %s8, 256, %s88, [#allocation12], 64, 64, 4
    $region37: #{tpu_custom_call.1} parent=1 // pred_fallthru
      _
    // Predicated region
    $region38: #{tpu_custom_call.1} parent=1 // pred_check
      _
    $region39: #{tpu_custom_call.1} parent=1 // pred_check_branch
      %95 = sbr.rel (0) target = $region41
    $region40: #{tpu_custom_call.1} parent=1 // pred_region
      _
    $region41: #{tpu_custom_call.1} parent=1 // pred_fallthru
      _
    // Predicated region
    $region42: #{tpu_custom_call.1} parent=1 // pred_check
      _
    $region43: #{tpu_custom_call.1} parent=1 // pred_check_branch
      %97 = sbr.rel (0) target = $region45
    $region44: #{tpu_custom_call.1} parent=1 // pred_region
      %98 = dma.done [#allocation3], 32
    $region45: #{tpu_custom_call.1} parent=1 // pred_fallthru
      _
    // Predicated region
    $region46: #{tpu_custom_call.1} parent=1 // pred_check
      _
    $region47: #{tpu_custom_call.1} parent=1 // pred_check_branch
      %100 = sbr.rel (0) target = $region49
    $region48: #{tpu_custom_call.1} parent=1 // pred_region
      %101 = dma.done [#allocation6], 32
    $region49: #{tpu_custom_call.1} parent=1 // pred_fallthru
      _
    // Predicated region
    $region50: #{tpu_custom_call.1} parent=1 // pred_check
      _
    $region51: #{tpu_custom_call.1} parent=1 // pred_check_branch
      %103 = sbr.rel (0) target = $region53
    $region52: #{tpu_custom_call.1} parent=1 // pred_region
      %104 = dma.done [#allocation6], 256
    $region53: #{tpu_custom_call.1} parent=1 // pred_fallthru
      _
    // Predicated region
    $region54: #{tpu_custom_call.1} parent=1 // pred_check
      _
    $region55: #{tpu_custom_call.1} parent=1 // pred_check_branch
      %106 = sbr.rel (0) target = $region57
    $region56: #{tpu_custom_call.1} parent=1 // pred_region
      %107 = dma.done [#allocation9], 128
    $region57: #{tpu_custom_call.1} parent=1 // pred_fallthru
      _
    // Predicated region
    $region58: #{tpu_custom_call.1} parent=1 // pred_check
      _
    $region59: #{tpu_custom_call.1} parent=1 // pred_check_branch
      %109 = sbr.rel (0) target = $region61
    $region60: #{tpu_custom_call.1} parent=1 // pred_region
      %110 = dma.done [#allocation9], 512
    $region61: #{tpu_custom_call.1} parent=1 // pred_fallthru
      _
    // Predicated region
    $region62: #{tpu_custom_call.1} parent=1 // pred_check
      _
    $region63: #{tpu_custom_call.1} parent=1 // pred_check_branch
      %112 = sbr.rel (0) target = $region65
    $region64: #{tpu_custom_call.1} parent=1 // pred_region
      %113 = dma.done [#allocation12], 256
    $region65: #{tpu_custom_call.1} parent=1 // pred_fallthru
      _
    %v115 = vld [vmem:[#allocation2] sm:$0x3]
    %v116 = vpack.c.bf16 %v115, %v115
    %v117 = vld [vmem:[#allocation5] sm:$0x3]
    %v118 = vpack.c.bf16 %v117, %v117
    %v119 = vld [vmem:[#allocation7] sm:$0xf]
    %v120 = vld [vmem:[#allocation7 + $0x4] sm:$0xf]
    %v121 = vld [vmem:[#allocation7 + $0x8] sm:$0xf]
    %v122 = vld [vmem:[#allocation7 + $0xc] sm:$0xf]
    %v123 = vld [vmem:[%s3] sm:$0x1]
    %v125 = vlaneseq
    %v126 = vshrl.u32 %v125, 7
    %v127 = vsub.s32 0, %v126
    %v128 = vrot.slane %v123, %v127
    %v134 = vunpack.c.l.b16 %v119
    %v135 = vunpack.c.l.b16 %v120
    %v136 = vunpack.c.l.b16 %v121
    %v137 = vunpack.c.l.b16 %v122
    %v138 = vpack.c.b16 %v135, %v134
    %v139 = vpack.c.b16 %v137, %v136
    %vm142 = vcmask 261120
    %v144 = vsel %vm142, %v116, 0
    %146 = vmatprep.subr.bf16.mxu0 0
    %147 = vmatpush1.bf16.msra.mxu0 0
    %148 = vmatprep.subr.bf16.mxu0 0
    %149 = vmatpush1.bf16.msra.mxu0 0
    %150 = vmatprep.subr.bf16.mxu0 0
    %151 = vmatpush1.bf16.msra.mxu0 0
    %152 = vmatprep.subr.bf16.mxu0 0
    %153 = vmatpush1.bf16.msra.mxu0 0
    %154 = vmatprep.subr.bf16.mxu0 0
    %155 = vmatpush1.bf16.msra.mxu0 0
    %156 = vmatprep.subr.bf16.mxu0 0
    %157 = vmatpush1.bf16.msra.mxu0 0
    %158 = vmatprep.subr.bf16.mxu0 0
    %159 = vmatpush1.bf16.msra.mxu0 %v139
    %160 = vmatprep.subr.bf16.mxu0 0
    %161 = vmatpush1.bf16.msra.mxu0 %v138
    %162 = vmatprep.subr.bf16.mxu0 0
    %163 = vmatpush2.bf16.msra.mxu0 0
    %164 = vmatprep.subr.bf16.mxu0 0
    %165 = vmatpush2.bf16.msra.mxu0 0
    %166 = vmatprep.subr.bf16.mxu0 0
    %167 = vmatpush2.bf16.msra.mxu0 0
    %168 = vmatprep.subr.bf16.mxu0 0
    %169 = vmatpush2.bf16.msra.mxu0 0
    %170 = vmatprep.subr.bf16.mxu0 0
    %171 = vmatpush2.bf16.msra.mxu0 0
    %172 = vmatprep.subr.bf16.mxu0 0
    %173 = vmatpush2.bf16.msra.mxu0 0
    %174 = vmatprep.subr.bf16.mxu0 0
    %175 = vmatpush2.bf16.msra.mxu0 0
    %176 = vmatprep.subr.bf16.mxu0 0
    %177 = vmatpush2.bf16.msra.mxu0 0
    %178 = vmatprep.mubr.bf16.mxu0 0
    %179 = vmatmul.mubr.bf16.gmra.mxu0 %v144
    %v180 = vpop.f32.mrf.mxu0
    %v181 = vadd.f32 %v128, %v180
    %v182 = vpop.f32.mrf.mxu0
    %v183 = vpop.f32.mrf.mxu0
    %v184 = vpop.f32.mrf.mxu0
    %185 = vdwg.mxu0
    %v186 = vmax.f32 %v181, 0.0
    %v187 = vld [vmem:[#allocation8] sm:$0xf]
    %v188 = vld [vmem:[#allocation8 + $0x4] sm:$0xf]
    %v191 = vunpack.c.l.b16 %v187
    %v192 = vunpack.c.l.b16 %v188
    %v193 = vpack.c.b16 %v192, %v191
    %vm195 = vcmask 130048
    %v197 = vsel %vm195, %v118, 0
    %199 = vmatprep.subr.bf16.mxu0 0
    %200 = vmatpush1.bf16.msra.mxu0 0
    %201 = vmatprep.subr.bf16.mxu0 0
    %202 = vmatpush1.bf16.msra.mxu0 0
    %203 = vmatprep.subr.bf16.mxu0 0
    %204 = vmatpush1.bf16.msra.mxu0 0
    %205 = vmatprep.subr.bf16.mxu0 0
    %206 = vmatpush1.bf16.msra.mxu0 0
    %207 = vmatprep.subr.bf16.mxu0 0
    %208 = vmatpush1.bf16.msra.mxu0 0
    %209 = vmatprep.subr.bf16.mxu0 0
    %210 = vmatpush1.bf16.msra.mxu0 0
    %211 = vmatprep.subr.bf16.mxu0 0
    %212 = vmatpush1.bf16.msra.mxu0 0
    %213 = vmatprep.subr.bf16.mxu0 0
    %214 = vmatpush1.bf16.msra.mxu0 %v193
    %215 = vmatprep.subr.bf16.mxu0 0
    %216 = vmatpush2.bf16.msra.mxu0 0
    %217 = vmatprep.subr.bf16.mxu0 0
    %218 = vmatpush2.bf16.msra.mxu0 0
    %219 = vmatprep.subr.bf16.mxu0 0
    %220 = vmatpush2.bf16.msra.mxu0 0
    %221 = vmatprep.subr.bf16.mxu0 0
    %222 = vmatpush2.bf16.msra.mxu0 0
    %223 = vmatprep.subr.bf16.mxu0 0
    %224 = vmatpush2.bf16.msra.mxu0 0
    %225 = vmatprep.subr.bf16.mxu0 0
    %226 = vmatpush2.bf16.msra.mxu0 0
    %227 = vmatprep.subr.bf16.mxu0 0
    %228 = vmatpush2.bf16.msra.mxu0 0
    %229 = vmatprep.subr.bf16.mxu0 0
    %230 = vmatpush2.bf16.msra.mxu0 0
    %231 = vmatprep.mubr.bf16.mxu0 0
    %232 = vmatmul.mubr.bf16.gmra.mxu0 %v197
    %v233 = vpop.f32.mrf.mxu0
    %v234 = vadd.f32 0.0, %v233
    %v235 = vpop.f32.mrf.mxu0
    %v236 = vpop.f32.mrf.mxu0
    %v237 = vpop.f32.mrf.mxu0
    %238 = vdwg.mxu0
    %v239 = vadd.f32 %v186, %v234
    %v240 = vld [vmem:[%s5] sm:$0x1]
    %v242 = vlaneseq
    %v243 = vshrl.u32 %v242, 7
    %v244 = vsub.s32 0, %v243
    %v245 = vrot.slane %v240, %v244
    %v247 = vadd.f32 %v239, %v245
    %v248 = vpack.c.bf16 %v247, %v247
    %v249 = vld [vmem:[#allocation10] sm:$0xf]
    %v250 = vld [vmem:[#allocation10 + $0x4] sm:$0xf]
    %v251 = vld [vmem:[#allocation10 + $0x8] sm:$0xf]
    %v252 = vld [vmem:[#allocation10 + $0xc] sm:$0xf]
    %v253 = vld [vmem:[#allocation10 + $0x10] sm:$0xf]
    %v254 = vld [vmem:[#allocation10 + $0x14] sm:$0xf]
    %v255 = vld [vmem:[#allocation10 + $0x18] sm:$0xf]
    %v256 = vld [vmem:[#allocation10 + $0x1c] sm:$0xf]
    %v257 = vld [vmem:[%s7] sm:$0x1]
    %v259 = vlaneseq
    %v260 = vshrl.u32 %v259, 7
    %v261 = vsub.s32 0, %v260
    %v262 = vrot.slane %v257, %v261
    %v272 = vunpack.c.l.b16 %v249
    %v273 = vunpack.c.l.b16 %v250
    %v274 = vunpack.c.l.b16 %v251
    %v275 = vunpack.c.l.b16 %v252
    %v276 = vunpack.c.l.b16 %v253
    %v277 = vunpack.c.l.b16 %v254
    %v278 = vunpack.c.l.b16 %v255
    %v279 = vunpack.c.l.b16 %v256
    %v280 = vpack.c.b16 %v273, %v272
    %v281 = vpack.c.b16 %v275, %v274
    %v282 = vpack.c.b16 %v277, %v276
    %v283 = vpack.c.b16 %v279, %v278
    %vm288 = vcmask 523264
    %v290 = vsel %vm288, %v248, 0
    %292 = vmatprep.subr.bf16.mxu0 0
    %293 = vmatpush1.bf16.msra.mxu0 0
    %294 = vmatprep.subr.bf16.mxu0 0
    %295 = vmatpush1.bf16.msra.mxu0 0
    %296 = vmatprep.subr.bf16.mxu0 0
    %297 = vmatpush1.bf16.msra.mxu0 0
    %298 = vmatprep.subr.bf16.mxu0 0
    %299 = vmatpush1.bf16.msra.mxu0 0
    %300 = vmatprep.subr.bf16.mxu0 0
    %301 = vmatpush1.bf16.msra.mxu0 %v283
    %302 = vmatprep.subr.bf16.mxu0 0
    %303 = vmatpush1.bf16.msra.mxu0 %v282
    %304 = vmatprep.subr.bf16.mxu0 0
    %305 = vmatpush1.bf16.msra.mxu0 %v281
    %306 = vmatprep.subr.bf16.mxu0 0
    %307 = vmatpush1.bf16.msra.mxu0 %v280
    %308 = vmatprep.subr.bf16.mxu0 0
    %309 = vmatpush2.bf16.msra.mxu0 0
    %310 = vmatprep.subr.bf16.mxu0 0
    %311 = vmatpush2.bf16.msra.mxu0 0
    %312 = vmatprep.subr.bf16.mxu0 0
    %313 = vmatpush2.bf16.msra.mxu0 0
    %314 = vmatprep.subr.bf16.mxu0 0
    %315 = vmatpush2.bf16.msra.mxu0 0
    %316 = vmatprep.subr.bf16.mxu0 0
    %317 = vmatpush2.bf16.msra.mxu0 0
    %318 = vmatprep.subr.bf16.mxu0 0
    %319 = vmatpush2.bf16.msra.mxu0 0
    %320 = vmatprep.subr.bf16.mxu0 0
    %321 = vmatpush2.bf16.msra.mxu0 0
    %322 = vmatprep.subr.bf16.mxu0 0
    %323 = vmatpush2.bf16.msra.mxu0 0
    %324 = vmatprep.mubr.bf16.mxu0 0
    %325 = vmatmul.mubr.bf16.gmra.mxu0 %v290
    %v326 = vpop.f32.mrf.mxu0
    %v327 = vadd.f32 %v262, %v326
    %v328 = vpop.f32.mrf.mxu0
    %v329 = vpop.f32.mrf.mxu0
    %v330 = vpop.f32.mrf.mxu0
    %331 = vdwg.mxu0
    %v332 = vmax.f32 %v327, 0.0
    %v333 = vld [vmem:[#allocation11] sm:$0xf]
    %v334 = vld [vmem:[#allocation11 + $0x4] sm:$0xf]
    %v335 = vld [vmem:[#allocation11 + $0x8] sm:$0xf]
    %v336 = vld [vmem:[#allocation11 + $0xc] sm:$0xf]
    %v337 = vld [vmem:[%s9] sm:$0x1]
    %v339 = vlaneseq
    %v340 = vshrl.u32 %v339, 7
    %v341 = vsub.s32 0, %v340
    %v342 = vrot.slane %v337, %v341
    %v348 = vunpack.c.l.b16 %v333
    %v349 = vunpack.c.l.b16 %v334
    %v350 = vunpack.c.l.b16 %v335
    %v351 = vunpack.c.l.b16 %v336
    %v352 = vpack.c.b16 %v349, %v348
    %v353 = vpack.c.b16 %v351, %v350
    %356 = vmatprep.subr.bf16.mxu0 0
    %357 = vmatpush1.bf16.msra.mxu0 0
    %358 = vmatprep.subr.bf16.mxu0 0
    %359 = vmatpush1.bf16.msra.mxu0 0
    %360 = vmatprep.subr.bf16.mxu0 0
    %361 = vmatpush1.bf16.msra.mxu0 0
    %362 = vmatprep.subr.bf16.mxu0 0
    %363 = vmatpush1.bf16.msra.mxu0 0
    %364 = vmatprep.subr.bf16.mxu0 0
    %365 = vmatpush1.bf16.msra.mxu0 0
    %366 = vmatprep.subr.bf16.mxu0 0
    %367 = vmatpush1.bf16.msra.mxu0 0
    %368 = vmatprep.subr.bf16.mxu0 0
    %369 = vmatpush1.bf16.msra.mxu0 %v353
    %370 = vmatprep.subr.bf16.mxu0 0
    %371 = vmatpush1.bf16.msra.mxu0 %v352
    %372 = vmatprep.subr.bf16.mxu0 0
    %373 = vmatpush2.bf16.msra.mxu0 0
    %374 = vmatprep.subr.bf16.mxu0 0
    %375 = vmatpush2.bf16.msra.mxu0 0
    %376 = vmatprep.subr.bf16.mxu0 0
    %377 = vmatpush2.bf16.msra.mxu0 0
    %378 = vmatprep.subr.bf16.mxu0 0
    %379 = vmatpush2.bf16.msra.mxu0 0
    %380 = vmatprep.subr.bf16.mxu0 0
    %381 = vmatpush2.bf16.msra.mxu0 0
    %382 = vmatprep.subr.bf16.mxu0 0
    %383 = vmatpush2.bf16.msra.mxu0 0
    %384 = vmatprep.subr.bf16.mxu0 0
    %385 = vmatpush2.bf16.msra.mxu0 0
    %386 = vmatprep.subr.bf16.mxu0 0
    %387 = vmatpush2.bf16.msra.mxu0 0
    %388 = vmatprep.mubr.bf16.mxu0 0
    %389 = vmatmul.mubr.bf16.gmra.mxu0 %v144
    %v390 = vpop.f32.mrf.mxu0
    %v391 = vadd.f32 %v342, %v390
    %v392 = vpop.f32.mrf.mxu0
    %v393 = vpop.f32.mrf.mxu0
    %v394 = vpop.f32.mrf.mxu0
    %395 = vdwg.mxu0
    %v396 = vadd.f32 %v332, %v391
    %vm397 = vcmask 517120
    %398 = vst.msk [vmem:[#allocation13] sm:$0x3] %vm397, %v396
    // Predicated region
    $region66: #{tpu_custom_call.1} parent=1 // pred_check
      _
    $region67: #{tpu_custom_call.1} parent=1 // pred_check_branch
      %400 = sbr.rel (0) target = $region69
    $region68: #{tpu_custom_call.1} parent=1 // pred_region
      %s402 = ssub.s32 32, 32
      %403 = vsyncadd [#allocation4], %s402
      %s405 = sshll.u32 [#allocation13], 4
      %s406 = int_to_ptr.vmem [resolvable:$true] %s405
      %408 = dma.vmem_to_hbm [thread:$0]  %s406, 32, %s10, [#allocation4]
    $region69: #{tpu_custom_call.1} parent=1 // pred_fallthru
      _
    // Predicated region
    $region70: #{tpu_custom_call.1} parent=1 // pred_check
      _
    $region71: #{tpu_custom_call.1} parent=1 // pred_check_branch
      %410 = sbr.rel (0) target = $region73
    $region72: #{tpu_custom_call.1} parent=1 // pred_region
      %411 = dma.done [#allocation4], 32
    $region73: #{tpu_custom_call.1} parent=1 // pred_fallthru
      _
    %412 = vsyncpa [#allocation3], 1
    %413 = vsyncpa [#allocation6], 1
    %414 = vsyncpa [#allocation9], 1
    %415 = vsyncpa [#allocation12], 1
    %416 = vsyncpa [#allocation4], 1

</llo_original>
